<compile_context>
chip_gen: v7x
topology: tpu7x:2x2x1
jax: 0.10.0
libtpu: 0.0.40
codegen_flags: <defaults>
</compile_context>

<pallas_src>
import functools

import jax
import jax.numpy as jnp
from jax.experimental import pallas as pl
from jax.experimental.pallas import tpu as pltpu


def _rmsnorm_kernel(x_ref, g_ref, b_ref, o_ref, *, eps, scale):
    # x_ref: (tile_m, D)   g_ref/b_ref: (1, D)   o_ref: (tile_m, D)
    x = x_ref[...].astype(jnp.float32)
    ss = jnp.sum(x * x, axis=-1, keepdims=True)           # (tile_m, 1)
    # F.normalize: x / max(||x||_2, eps), then * sqrt(dim) * gamma [+ bias]
    inv = scale / jnp.maximum(jnp.sqrt(ss), eps)           # (tile_m, 1)
    y = x * inv * g_ref[...].astype(jnp.float32) + b_ref[...].astype(jnp.float32)
    o_ref[...] = y.astype(o_ref.dtype)


def rms_norm(x, gamma, bias=None, *, channel_first=False, eps=1e-12, tile_m=256):
    """RMSNorm matching the PyTorch module's forward semantics."""
    if channel_first:
        y = rms_norm(jnp.moveaxis(x, 1, -1), gamma, bias,
                     channel_first=False, eps=eps, tile_m=tile_m)
        return jnp.moveaxis(y, -1, 1)

    orig_shape = x.shape
    D = orig_shape[-1]
    assert gamma.shape == (D,), f"gamma must have shape ({D},), got {gamma.shape}"
    scale = float(D) ** 0.5

    x2d = x.reshape(-1, D)
    M = x2d.shape[0]

    # --- VMEM-aware row-tile selection ------------------------------------
    itemsize = jnp.dtype(x.dtype).itemsize
    # Double-buffered input + output tiles must fit a conservative budget
    # that leaves headroom even on v7x (64 MiB physical VMEM per TC).
    budget = 24 * 1024 * 1024
    per_row_bytes = 2 * 2 * D * itemsize                    # (in + out) x 2 buffers
    block_m = min(tile_m, max(8, (budget // max(per_row_bytes, 1)) // 8 * 8))
    m_rounded = ((M + 7) // 8) * 8
    block_m = min(block_m, m_rounded)

    num_blocks = pl.cdiv(M, block_m)
    M_pad = num_blocks * block_m
    if M_pad != M:
        # Zero rows are safe: ||0|| = 0 -> clamped to eps -> output rows are 0.
        x2d = jnp.pad(x2d, ((0, M_pad - M), (0, 0)))

    g2d = gamma.reshape(1, D)
    b_arr = bias if bias is not None else jnp.zeros((D,), gamma.dtype)
    b2d = b_arr.reshape(1, D)

    kernel = functools.partial(_rmsnorm_kernel, eps=float(eps), scale=scale)

    # Raise scoped VMEM modestly above the default when tiles need it, but
    # stay within v7x's 64 MiB physical scratchpad.
    tile_bytes = block_m * D * max(itemsize, 4)
    vmem_limit = int(min(max(4 * tile_bytes + 8 * D * 4 + (8 << 20), 32 << 20),
                         48 << 20))

    out = pl.pallas_call(
        kernel,
        out_shape=jax.ShapeDtypeStruct((M_pad, D), x.dtype),
        grid_spec=pltpu.PrefetchScalarGridSpec(
            num_scalar_prefetch=0,
            grid=(num_blocks,),
            in_specs=[
                pl.BlockSpec((block_m, D), lambda i: (i, 0)),   # x rows
                pl.BlockSpec((1, D), lambda i: (0, 0)),         # gamma (resident)
                pl.BlockSpec((1, D), lambda i: (0, 0)),         # bias  (resident)
            ],
            out_specs=pl.BlockSpec((block_m, D), lambda i: (i, 0)),
        ),
        compiler_params=pltpu.CompilerParams(
            dimension_semantics=("parallel",),
            vmem_limit_bytes=vmem_limit,
        ),
    )(x2d, g2d, b2d)

    if M_pad != M:
        out = out[:M]
    return out.reshape(orig_shape)


def reference_rmsnorm(x, gamma, bias=None, channel_first=False, eps=1e-12):
    """Pure-JAX reference mirroring the PyTorch forward."""
    axis = 1 if channel_first else -1
    xf = x.astype(jnp.float32)
    norm = jnp.sqrt(jnp.sum(xf * xf, axis=axis, keepdims=True))
    scale = gamma.shape[0] ** 0.5
    shape = [1] * x.ndim
    shape[axis] = gamma.shape[0]
    y = xf / jnp.maximum(norm, eps) * scale * gamma.astype(jnp.float32).reshape(shape)
    if bias is not None:
        y = y + bias.astype(jnp.float32).reshape(shape)
    return y.astype(x.dtype)


if __name__ == "__main__":
    key = jax.random.PRNGKey(0)
    k1, k2, k3, k4, k5 = jax.random.split(key, 5)

    # Case 1: feature-last (channel_first=False), with bias. dim multiple of
    # 128 keeps the output lane-dense.
    batch, seq, dim = 2, 8, 256
    x = jax.random.normal(k1, (batch, seq, dim), jnp.float32)
    gamma = 1.0 + 0.1 * jax.random.normal(k2, (dim,), jnp.float32)
    bias = 0.05 * jax.random.normal(k3, (dim,), jnp.float32)

    y = jax.block_until_ready(rms_norm(x, gamma, bias))
    y_ref = reference_rmsnorm(x, gamma, bias)
    assert y.shape == x.shape
    assert jnp.allclose(y, y_ref, atol=1e-5, rtol=1e-5), (
        f"max abs err = {float(jnp.max(jnp.abs(y - y_ref)))}")

    # Case 2: channel_first=True (normalize over dim=1), no bias.
    b2, c2, h2, w2 = 2, 32, 8, 8
    x2 = jax.random.normal(k4, (b2, c2, h2, w2), jnp.float32)
    gamma2 = 1.0 + 0.1 * jax.random.normal(k5, (c2,), jnp.float32)

    y2 = jax.block_until_ready(rms_norm(x2, gamma2, None, channel_first=True))
    y2_ref = reference_rmsnorm(x2, gamma2, None, channel_first=True)
    assert y2.shape == x2.shape
    assert jnp.allclose(y2, y2_ref, atol=1e-5, rtol=1e-5), (
        f"max abs err = {float(jnp.max(jnp.abs(y2 - y2_ref)))}")

    print("KERNEL_OK")
</pallas_src>

<mosaic_0001>
module attributes {stable_mosaic.version = 11 : i64} {
  func.func @_rmsnorm_kernel(%arg0: i32, %arg1: memref<16x256xf32, #tpu.memory_space<vmem>>, %arg2: memref<1x256xf32, #tpu.memory_space<vmem>>, %arg3: memref<1x256xf32, #tpu.memory_space<vmem>>, %arg4: memref<16x256xf32, #tpu.memory_space<vmem>>) attributes {dimension_semantics = [#tpu.dimension_semantics<parallel>], iteration_bounds = array<i64: 1>, scalar_prefetch = 0 : i64, scratch_operands = 0 : i64, tpu.core_type = #tpu.core_type<tc>, window_params = [{transform_indices = @transform_0, window_bounds = array<i64: 16, 256>}, {pipeline_mode = #tpu.pipeline_mode<synchronous>, transform_indices = @transform_1, window_bounds = array<i64: 1, 256>}, {pipeline_mode = #tpu.pipeline_mode<synchronous>, transform_indices = @transform_2, window_bounds = array<i64: 1, 256>}, {transform_indices = @transform_3, window_bounds = array<i64: 16, 256>}]} {
    %c0 = arith.constant 0 : index
    %c0_0 = arith.constant 0 : index
    %0 = vector.load %arg1[%c0, %c0_0] : memref<16x256xf32, #tpu.memory_space<vmem>>, vector<16x256xf32>
    %1 = arith.mulf %0, %0 : vector<16x256xf32>
    %cst = arith.constant dense<0.000000e+00> : vector<16xf32>
    %2 = vector.multi_reduction <add>, %1, %cst [1] : vector<16x256xf32> to vector<16xf32>
    %3 = vector.shape_cast %2 : vector<16xf32> to vector<16x1xf32>
    %4 = math.sqrt %3 : vector<16x1xf32>
    %cst_1 = arith.constant 9.99999996E-13 : f32
    %5 = vector.broadcast %cst_1 : f32 to vector<16x1xf32>
    %6 = arith.maximumf %4, %5 : vector<16x1xf32>
    %cst_2 = arith.constant 1.600000e+01 : f32
    %7 = vector.broadcast %cst_2 : f32 to vector<16x1xf32>
    %8 = arith.divf %7, %6 : vector<16x1xf32>
    %9 = vector.broadcast %8 : vector<16x1xf32> to vector<16x256xf32>
    %10 = arith.mulf %0, %9 : vector<16x256xf32>
    %c0_3 = arith.constant 0 : index
    %c0_4 = arith.constant 0 : index
    %11 = vector.load %arg2[%c0_3, %c0_4] : memref<1x256xf32, #tpu.memory_space<vmem>>, vector<1x256xf32>
    %12 = vector.broadcast %11 : vector<1x256xf32> to vector<16x256xf32>
    %13 = arith.mulf %10, %12 : vector<16x256xf32>
    %c0_5 = arith.constant 0 : index
    %c0_6 = arith.constant 0 : index
    %14 = vector.load %arg3[%c0_5, %c0_6] : memref<1x256xf32, #tpu.memory_space<vmem>>, vector<1x256xf32>
    %15 = vector.broadcast %14 : vector<1x256xf32> to vector<16x256xf32>
    %16 = arith.addf %13, %15 : vector<16x256xf32>
    %c0_7 = arith.constant 0 : index
    %c0_8 = arith.constant 0 : index
    %17 = vector.load %arg4[%c0_7, %c0_8] : memref<16x256xf32, #tpu.memory_space<vmem>>, vector<16x256xf32>
    tpu.vector_store %arg4[%c0_7, %c0_8], %16 {strides = array<i32>} : memref<16x256xf32, #tpu.memory_space<vmem>>, vector<16x256xf32>,
    return
  }
  func.func @transform_0(%arg0: i32) -> (i32, i32) {
    %c0_i32 = arith.constant 0 : i32
    %c0_i32_0 = arith.constant 0 : i32
    return %arg0, %c0_i32 : i32, i32
  }
  func.func @transform_1(%arg0: i32) -> (i32, i32) {
    %c0_i32 = arith.constant 0 : i32
    %c0_i32_0 = arith.constant 0 : i32
    %c0_i32_1 = arith.constant 0 : i32
    return %c0_i32, %c0_i32_0 : i32, i32
  }
  func.func @transform_2(%arg0: i32) -> (i32, i32) {
    %c0_i32 = arith.constant 0 : i32
    %c0_i32_0 = arith.constant 0 : i32
    %c0_i32_1 = arith.constant 0 : i32
    return %c0_i32, %c0_i32_0 : i32, i32
  }
  func.func @transform_3(%arg0: i32) -> (i32, i32) {
    %c0_i32 = arith.constant 0 : i32
    %c0_i32_0 = arith.constant 0 : i32
    return %arg0, %c0_i32 : i32, i32
  }
}

</mosaic_0001>

<llo_original>
// kernel: tpu_custom_call.1
$region0: #{tpu_custom_call.1}
  #allocation0 [shape = 'u32[]', space=smem, size = 0x4, offset = 0x4, fixed_abs, tag = 'smem constant byte address 0x4 - core index']
  #allocation1 [shape = 'u32[144,128]{1,0:T(1,128)}', space=vmem, size = 0x12000, scoped, tag = 'internal scratch']
  %s0 = inlined_call_operand.hbm [shape: f32[16,256], index: 0, kind: input, shape index: {}]
  %s1 = inlined_call_operand.vmem [shape: f32[1,256], index: 1, kind: input, shape index: {}]
  %s2 = inlined_call_operand.vmem [shape: f32[1,256], index: 2, kind: input, shape index: {}]
  %s3 = inlined_call_operand.hbm [shape: f32[16,256], index: 3, kind: output, shape index: {}]
  %s4 = sld [smem:[#allocation0]]
  $region26: #{tpu_custom_call.1} parent=0
    _
  %s6 = ssub.s32 1, %s4
  %s7 = scalar_select 0, %s6, %s4
  $region1: #{tpu_custom_call.1} parent=0
    #allocation2 [shape = 'u8[16384]{0}', space=vmem, size = 0x4000, scoped, tag = 'input window, operand 0, single buffered']
    #allocation3 [shape = 's32[1]{0}', space=sflag, size = 0x4, scoped, tag = 'scoped memory for tpu_custom_call.1']
    #allocation4 [shape = 's32[1]{0}', space=sflag, size = 0x4, scoped, tag = 'scoped memory for tpu_custom_call.1']
    #allocation5 [shape = 'u8[16384]{0}', space=vmem, size = 0x4000, scoped, tag = 'output window, operand 0, single buffered']
    %8 = vsyncpa [#allocation3], 0
    %9 = vsyncpa [#allocation4], 0
    // Predicated region
    $region2: #{tpu_custom_call.1} parent=1 // pred_check
      _
    $region3: #{tpu_custom_call.1} parent=1 // pred_check_branch
      %11 = sbr.rel (0) target = $region5
    $region4: #{tpu_custom_call.1} parent=1 // pred_region
      %s13 = ssub.s32 512, 512
      %14 = vsyncadd [#allocation3], %s13
      %s15 = sshll.u32 [#allocation2], 4
      %s16 = int_to_ptr.vmem [resolvable:$true] %s15
      %21 = dma.hbm_to_vmem [thread:$0]  %s0, 512, %s16, [#allocation3], 256, 256, 16
    $region5: #{tpu_custom_call.1} parent=1 // pred_fallthru
      _
    // Predicated region
    $region6: #{tpu_custom_call.1} parent=1 // pred_check
      _
    $region7: #{tpu_custom_call.1} parent=1 // pred_check_branch
      %23 = sbr.rel (0) target = $region9
    $region8: #{tpu_custom_call.1} parent=1 // pred_region
      _
    $region9: #{tpu_custom_call.1} parent=1 // pred_fallthru
      _
    // Predicated region
    $region10: #{tpu_custom_call.1} parent=1 // pred_check
      _
    $region11: #{tpu_custom_call.1} parent=1 // pred_check_branch
      %25 = sbr.rel (0) target = $region13
    $region12: #{tpu_custom_call.1} parent=1 // pred_region
      _
    $region13: #{tpu_custom_call.1} parent=1 // pred_fallthru
      _
    // Predicated region
    $region14: #{tpu_custom_call.1} parent=1 // pred_check
      _
    $region15: #{tpu_custom_call.1} parent=1 // pred_check_branch
      %27 = sbr.rel (0) target = $region17
    $region16: #{tpu_custom_call.1} parent=1 // pred_region
      %28 = dma.done [#allocation3], 512
    $region17: #{tpu_custom_call.1} parent=1 // pred_fallthru
      _
    %v29 = vld [vmem:[#allocation2] sm:$0xff]
    %v30 = vld [vmem:[#allocation2 + $0x8] sm:$0xff]
    %v31 = vld [vmem:[#allocation2 + $0x10] sm:$0xff]
    %v32 = vld [vmem:[#allocation2 + $0x18] sm:$0xff]
    %v33 = vmul.f32 %v29, %v29
    %v34 = vmul.f32 %v30, %v30
    %v35 = vmul.f32 %v31, %v31
    %v36 = vmul.f32 %v32, %v32
    %v37 = vadd.f32 %v33, %v34
    %38 = vadd.xlane.f32.xlu0 %v37
    %v39 = vpop.xlane.xlu0 %38
    %v40 = vadd.f32 %v35, %v36
    %41 = vadd.xlane.f32.xlu0 %v40
    %v42 = vpop.xlane.xlu0 %41
    %v43 = vrsqrt.pop %v39
    %v44 = vmul.f32 %v39, %v43
    %vm45 = vcmp.eq.f32.partialorder %v39, inf
    %v46 = vsel %vm45, %v39, %v44
    %vm47 = vcmp.eq.f32.partialorder %v39, 0.0
    %v48 = vand.u32 %v39, 2147483648
    %v49 = vsel %vm47, %v48, %v46
    %v50 = vrsqrt.pop %v42
    %v51 = vmul.f32 %v42, %v50
    %vm52 = vcmp.eq.f32.partialorder %v42, inf
    %v53 = vsel %vm52, %v42, %v51
    %vm54 = vcmp.eq.f32.partialorder %v42, 0.0
    %v55 = vand.u32 %v42, 2147483648
    %v56 = vsel %vm54, %v55, %v53
    %v57 = vmax.f32 %v49, 1e-12
    %v58 = vmax.f32 %v56, 1e-12
    %v59 = vrcp.pop %v57
    %v60 = vmul.f32 16.0, %v59
    %v61 = vrcp.pop %v58
    %v62 = vmul.f32 16.0, %v61
    %v63 = vmul.f32 %v29, %v60
    %v64 = vmul.f32 %v30, %v60
    %v65 = vmul.f32 %v31, %v62
    %v66 = vmul.f32 %v32, %v62
    %v67 = vld [vmem:[%s1] sm:$0x3]
    %v69 = vlaneseq
    %v70 = vshrl.u32 %v69, 7
    %v71 = vsub.s32 0, %v70
    %v72 = vrot.slane %v67, %v71
    %v73 = vlaneseq
    %v74 = vshrl.u32 %v73, 7
    %v75 = vsub.s32 1, %v74
    %v76 = vrot.slane %v67, %v75
    %v79 = vmul.f32 %v63, %v72
    %v80 = vmul.f32 %v64, %v76
    %v81 = vmul.f32 %v65, %v72
    %v82 = vmul.f32 %v66, %v76
    %v83 = vld [vmem:[%s2] sm:$0x3]
    %v85 = vlaneseq
    %v86 = vshrl.u32 %v85, 7
    %v87 = vsub.s32 0, %v86
    %v88 = vrot.slane %v83, %v87
    %v89 = vlaneseq
    %v90 = vshrl.u32 %v89, 7
    %v91 = vsub.s32 1, %v90
    %v92 = vrot.slane %v83, %v91
    %v95 = vadd.f32 %v79, %v88
    %v96 = vadd.f32 %v80, %v92
    %v97 = vadd.f32 %v81, %v88
    %v98 = vadd.f32 %v82, %v92
    %99 = vst [vmem:[#allocation5] sm:$0xff] %v95
    %100 = vst [vmem:[#allocation5 + $0x8] sm:$0xff] %v96
    %101 = vst [vmem:[#allocation5 + $0x10] sm:$0xff] %v97
    %102 = vst [vmem:[#allocation5 + $0x18] sm:$0xff] %v98
    // Predicated region
    $region18: #{tpu_custom_call.1} parent=1 // pred_check
      _
    $region19: #{tpu_custom_call.1} parent=1 // pred_check_branch
      %104 = sbr.rel (0) target = $region21
    $region20: #{tpu_custom_call.1} parent=1 // pred_region
      %s106 = ssub.s32 512, 512
      %107 = vsyncadd [#allocation4], %s106
      %s108 = sshll.u32 [#allocation5], 4
      %s109 = int_to_ptr.vmem [resolvable:$true] %s108
      %114 = dma.vmem_to_hbm [thread:$0]  %s109, 512, %s3, [#allocation4], 256, 256, 16
    $region21: #{tpu_custom_call.1} parent=1 // pred_fallthru
      _
    // Predicated region
    $region22: #{tpu_custom_call.1} parent=1 // pred_check
      _
    $region23: #{tpu_custom_call.1} parent=1 // pred_check_branch
      %116 = sbr.rel (0) target = $region25
    $region24: #{tpu_custom_call.1} parent=1 // pred_region
      %117 = dma.done [#allocation4], 512
    $region25: #{tpu_custom_call.1} parent=1 // pred_fallthru
      _
    %118 = vsyncpa [#allocation3], 1
    %119 = vsyncpa [#allocation4], 1

</llo_original>
